<compile_context>
chip_gen: v6e
topology: v6e:2x2x1
jax: 0.10.0
libtpu: 0.0.40
codegen_flags: <defaults>
</compile_context>

<pallas_src>
import functools

import jax
import jax.numpy as jnp
from jax.experimental import pallas as pl
from jax.experimental.pallas import tpu as pltpu

LANE = 128
SUBLANE = 8


def _map_loss_kernel(t_ref, m_ref, sy_ref, psum_ref, pmax_ref, *,
                     block_rows, valid_rows, need_mask):
    """Reduce one (block_rows, 128) tile into (8, 128) partial sum / max."""
    t = t_ref[...].astype(jnp.float32)
    m = m_ref[...].astype(jnp.float32)
    sy = sy_ref[...].astype(jnp.float32)

    diff = t - m
    t1 = (diff * diff) / sy
    vals = t1 + jnp.log(sy)

    if need_mask:
        # Rows beyond `valid_rows` belong to the padded Pallas edge block and
        # contain undefined data: mask them out of both the sum and the max.
        i = pl.program_id(0)
        row_ids = jax.lax.broadcasted_iota(jnp.int32, (block_rows, LANE), 0)
        in_bounds = (i * block_rows + row_ids) < valid_rows
        vals = jnp.where(in_bounds, vals, jnp.float32(0.0))
        t1 = jnp.where(in_bounds, t1, -jnp.inf)

    # Reduce only along the (grouped) sublane axis: a short chain of vreg
    # adds/maxes on the VPU.  Cross-lane reduction is deferred to plain JAX.
    groups = block_rows // SUBLANE
    psum_ref[...] = vals.reshape(groups, SUBLANE, LANE).sum(axis=0)
    pmax_ref[...] = t1.reshape(groups, SUBLANE, LANE).max(axis=0)


def _to_lane_slab(x, pad_value, pad_elems, rows):
    """Flatten to (rows, 128) in native dtype; pad only the ragged tail."""
    flat = x.reshape(-1)
    if pad_elems:
        fill = jnp.full((pad_elems,), pad_value, dtype=flat.dtype)
        flat = jnp.concatenate([flat, fill])
    return flat.reshape(rows, LANE)


@functools.partial(jax.jit, static_argnames=("tile_rows",))
def map_loss(target, mu, sigma_mu, sigma_n, sigma_y, *, tile_rows=1024):
    # sigma_mu / sigma_n accepted for signature parity but unused, matching
    # the PyTorch module (they do not enter the forward loss).
    del sigma_mu, sigma_n

    n_elems = target.size
    chunk = LANE * SUBLANE  # 1024: keeps rows a multiple of 8 (clean tiling)
    rem = n_elems % chunk
    pad_elems = (chunk - rem) if rem else 0
    rows = (n_elems + pad_elems) // LANE

    # Neutral tail padding (only when needed): target==mu -> t1 = 0,
    # sigma_y==1 -> log == 0.  Contributes 0 to the sum and 0 (<= real t1
    # for positive sigma_y) to the max.
    t2d = _to_lane_slab(target, 0, pad_elems, rows)
    m2d = _to_lane_slab(mu, 0, pad_elems, rows)
    s2d = _to_lane_slab(sigma_y, 1, pad_elems, rows)

    block_rows = min(tile_rows, rows)          # both are multiples of 8
    num_blocks = pl.cdiv(rows, block_rows)
    need_mask = (rows % block_rows) != 0       # ragged edge block -> mask rows

    kernel = functools.partial(
        _map_loss_kernel,
        block_rows=block_rows,
        valid_rows=rows,
        need_mask=need_mask,
    )

    psum, pmax = pl.pallas_call(
        kernel,
        out_shape=(
            jax.ShapeDtypeStruct((num_blocks * SUBLANE, LANE), jnp.float32),
            jax.ShapeDtypeStruct((num_blocks * SUBLANE, LANE), jnp.float32),
        ),
        grid_spec=pl.GridSpec(
            grid=(num_blocks,),
            in_specs=[
                pl.BlockSpec((block_rows, LANE), lambda i: (i, 0)),
                pl.BlockSpec((block_rows, LANE), lambda i: (i, 0)),
                pl.BlockSpec((block_rows, LANE), lambda i: (i, 0)),
            ],
            out_specs=(
                pl.BlockSpec((SUBLANE, LANE), lambda i: (i, 0)),
                pl.BlockSpec((SUBLANE, LANE), lambda i: (i, 0)),
            ),
        ),
        compiler_params=pltpu.CompilerParams(
            # Each grid step writes a distinct output block -> safe to shard
            # across TensorCores (helps v7x; harmless on v5e/v6e).
            dimension_semantics=("parallel",),
        ),
    )(t2d, m2d, s2d)

    loss = jnp.sum(psum) / jnp.float32(n_elems)
    t1_max = jnp.max(pmax)
    # if t1.max() > 1e8 -> zero the loss (mirror of loss.data.zero_())
    loss = jnp.where(t1_max > jnp.float32(1e8), jnp.float32(0.0), loss)
    return loss


def map_loss_ref(target, mu, sigma_y):
    t1 = (target - mu) ** 2 / sigma_y
    t2 = jnp.log(sigma_y)
    loss = jnp.mean(t1 + t2)
    return jnp.where(jnp.max(t1) > 1e8, 0.0, loss)


if __name__ == "__main__":
    key = jax.random.PRNGKey(0)
    k1, k2, k3, k4, k5 = jax.random.split(key, 5)

    B, C, H, W = 2, 4, 16, 16  # NCHW, matches the PyTorch convention
    target = jax.random.normal(k1, (B, C, H, W), jnp.float32)
    mu = jax.random.normal(k2, (B, C, H, W), jnp.float32)
    sigma_mu = jnp.exp(jax.random.normal(k3, (B, C, H, W), jnp.float32))  # unused
    sigma_n = jnp.exp(jax.random.normal(k4, (B, C, H, W), jnp.float32))   # unused
    sigma_y = jnp.exp(jax.random.normal(k5, (B, C, H, W), jnp.float32)) + 1e-3

    loss = map_loss(target, mu, sigma_mu, sigma_n, sigma_y)
    jax.block_until_ready(loss)

    ref = map_loss_ref(target, mu, sigma_y)
    assert jnp.allclose(loss, ref, rtol=1e-5, atol=1e-5), (loss, ref)

    # Also exercise a shape that needs tail padding + edge-block masking.
    n_odd = 5000
    t_o = jax.random.normal(k1, (n_odd,), jnp.float32)
    m_o = jax.random.normal(k2, (n_odd,), jnp.float32)
    s_o = jnp.exp(jax.random.normal(k5, (n_odd,), jnp.float32)) + 1e-3
    loss_o = map_loss(t_o, m_o, s_o, s_o, s_o, tile_rows=16)
    jax.block_until_ready(loss_o)
    assert jnp.allclose(loss_o, map_loss_ref(t_o, m_o, s_o), rtol=1e-5, atol=1e-5)

    print("KERNEL_OK")
</pallas_src>

<mosaic_0001>
module attributes {stable_mosaic.version = 11 : i64} {
  func.func @_map_loss_kernel(%arg0: i32, %arg1: memref<16x128xf32, #tpu.memory_space<vmem>>, %arg2: memref<16x128xf32, #tpu.memory_space<vmem>>, %arg3: memref<16x128xf32, #tpu.memory_space<vmem>>, %arg4: memref<8x128xf32, #tpu.memory_space<vmem>>, %arg5: memref<8x128xf32, #tpu.memory_space<vmem>>) attributes {dimension_semantics = [#tpu.dimension_semantics<parallel>], iteration_bounds = array<i64: 1>, scalar_prefetch = 0 : i64, scratch_operands = 0 : i64, tpu.core_type = #tpu.core_type<tc>, window_params = [{transform_indices = @transform_0, window_bounds = array<i64: 16, 128>}, {transform_indices = @transform_1, window_bounds = array<i64: 16, 128>}, {transform_indices = @transform_2, window_bounds = array<i64: 16, 128>}, {transform_indices = @transform_3, window_bounds = array<i64: 8, 128>}, {transform_indices = @transform_4, window_bounds = array<i64: 8, 128>}]} {
    %c0 = arith.constant 0 : index
    %c0_0 = arith.constant 0 : index
    %0 = vector.load %arg1[%c0, %c0_0] : memref<16x128xf32, #tpu.memory_space<vmem>>, vector<16x128xf32>
    %c0_1 = arith.constant 0 : index
    %c0_2 = arith.constant 0 : index
    %1 = vector.load %arg2[%c0_1, %c0_2] : memref<16x128xf32, #tpu.memory_space<vmem>>, vector<16x128xf32>
    %c0_3 = arith.constant 0 : index
    %c0_4 = arith.constant 0 : index
    %2 = vector.load %arg3[%c0_3, %c0_4] : memref<16x128xf32, #tpu.memory_space<vmem>>, vector<16x128xf32>
    %3 = arith.subf %0, %1 : vector<16x128xf32>
    %4 = arith.mulf %3, %3 : vector<16x128xf32>
    %5 = arith.divf %4, %2 : vector<16x128xf32>
    %6 = math.log %2 : vector<16x128xf32>
    %7 = arith.addf %5, %6 : vector<16x128xf32>
    %8 = vector.shape_cast %7 : vector<16x128xf32> to vector<2x8x128xf32>
    %cst = arith.constant dense<0.000000e+00> : vector<8x128xf32>
    %9 = vector.multi_reduction <add>, %8, %cst [0] : vector<2x8x128xf32> to vector<8x128xf32>
    %c0_5 = arith.constant 0 : index
    %c0_6 = arith.constant 0 : index
    %10 = vector.load %arg4[%c0_5, %c0_6] : memref<8x128xf32, #tpu.memory_space<vmem>>, vector<8x128xf32>
    tpu.vector_store %arg4[%c0_5, %c0_6], %9 {strides = array<i32>} : memref<8x128xf32, #tpu.memory_space<vmem>>, vector<8x128xf32>,
    %11 = vector.shape_cast %5 : vector<16x128xf32> to vector<2x8x128xf32>
    %cst_7 = arith.constant dense<0xFF800000> : vector<8x128xf32>
    %12 = vector.multi_reduction <maximumf>, %11, %cst_7 [0] : vector<2x8x128xf32> to vector<8x128xf32>
    %c0_8 = arith.constant 0 : index
    %c0_9 = arith.constant 0 : index
    %13 = vector.load %arg5[%c0_8, %c0_9] : memref<8x128xf32, #tpu.memory_space<vmem>>, vector<8x128xf32>
    tpu.vector_store %arg5[%c0_8, %c0_9], %12 {strides = array<i32>} : memref<8x128xf32, #tpu.memory_space<vmem>>, vector<8x128xf32>,
    return
  }
  func.func @transform_0(%arg0: i32) -> (i32, i32) {
    %c0_i32 = arith.constant 0 : i32
    %c0_i32_0 = arith.constant 0 : i32
    return %arg0, %c0_i32 : i32, i32
  }
  func.func @transform_1(%arg0: i32) -> (i32, i32) {
    %c0_i32 = arith.constant 0 : i32
    %c0_i32_0 = arith.constant 0 : i32
    return %arg0, %c0_i32 : i32, i32
  }
  func.func @transform_2(%arg0: i32) -> (i32, i32) {
    %c0_i32 = arith.constant 0 : i32
    %c0_i32_0 = arith.constant 0 : i32
    return %arg0, %c0_i32 : i32, i32
  }
  func.func @transform_3(%arg0: i32) -> (i32, i32) {
    %c0_i32 = arith.constant 0 : i32
    %c0_i32_0 = arith.constant 0 : i32
    return %arg0, %c0_i32 : i32, i32
  }
  func.func @transform_4(%arg0: i32) -> (i32, i32) {
    %c0_i32 = arith.constant 0 : i32
    %c0_i32_0 = arith.constant 0 : i32
    return %arg0, %c0_i32 : i32, i32
  }
}

</mosaic_0001>

<llo_original>
// kernel: map_loss.1
$region0: #{map_loss.1}
  #allocation0 [shape = 'u32[]', space=smem, size = 0x4, offset = 0x4, fixed_abs, tag = 'smem constant byte address 0x4 - core index']
  #allocation1 [shape = 'u32[144,128]{1,0:T(1,128)}', space=vmem, size = 0x12000, scoped, tag = 'internal scratch']
  %s0 = inlined_call_operand.vmem [shape: f32[16,128], index: 0, kind: input, shape index: {}]
  %s1 = inlined_call_operand.vmem [shape: f32[16,128], index: 1, kind: input, shape index: {}]
  %s2 = inlined_call_operand.vmem [shape: f32[16,128], index: 2, kind: input, shape index: {}]
  %s3 = inlined_call_operand.vmem [shape: f32[8,128], index: 3, kind: output, shape index: {0}]
  %s4 = inlined_call_operand.vmem [shape: f32[8,128], index: 4, kind: output, shape index: {1}]
  %5 = xla_tuple %s3, %s4
  %s6 = sld [smem:[#allocation0]]
  $region30: #{map_loss.1} parent=0
    _
  %s8 = ssub.s32 1, %s6
  %s9 = scalar_select 0, %s8, %s6
  // Predicated region
  $region2: #{map_loss.1} parent=0 // pred_check
    _
  $region3: #{map_loss.1} parent=0 // pred_check_branch
    %11 = sbr.rel (0) target = $region5
  $region4: #{map_loss.1} parent=0 // pred_region
    _
  $region5: #{map_loss.1} parent=0 // pred_fallthru
    _
  // Predicated region
  $region6: #{map_loss.1} parent=0 // pred_check
    _
  $region7: #{map_loss.1} parent=0 // pred_check_branch
    %13 = sbr.rel (0) target = $region9
  $region8: #{map_loss.1} parent=0 // pred_region
    _
  $region9: #{map_loss.1} parent=0 // pred_fallthru
    _
  // Predicated region
  $region10: #{map_loss.1} parent=0 // pred_check
    _
  $region11: #{map_loss.1} parent=0 // pred_check_branch
    %15 = sbr.rel (0) target = $region13
  $region12: #{map_loss.1} parent=0 // pred_region
    _
  $region13: #{map_loss.1} parent=0 // pred_fallthru
    _
  %v16 = vld [vmem:[%s0] sm:$0xff]
  %v17 = vld [vmem:[%s0 + $0x8] sm:$0xff]
  %v18 = vld [vmem:[%s1] sm:$0xff]
  %v19 = vld [vmem:[%s1 + $0x8] sm:$0xff]
  %v20 = vld [vmem:[%s2] sm:$0xff]
  %v21 = vld [vmem:[%s2 + $0x8] sm:$0xff]
  %v22 = vsub.f32 %v16, %v18
  %v23 = vsub.f32 %v17, %v19
  %v24 = vmul.f32 %v22, %v22
  %v25 = vmul.f32 %v23, %v23
  %v26 = vrcp.pop %v20
  %v27 = vmul.f32 %v24, %v26
  %v28 = vrcp.pop %v21
  %v29 = vmul.f32 %v25, %v28
  %v30 = vlog2.pop %v20
  %v31 = vmul.f32 %v30, 0.6931472
  %v32 = vlog2.pop %v21
  %v33 = vmul.f32 %v32, 0.6931472
  %v34 = vadd.f32 %v27, %v31
  %v35 = vadd.f32 %v29, %v33
  %v36 = vadd.f32 %v34, %v35
  %37 = vst [vmem:[%s3] sm:$0xff] %v36
  %v38 = vmax.f32 %v27, %v29
  %39 = vst [vmem:[%s4] sm:$0xff] %v38
  // Predicated region
  $region14: #{map_loss.1} parent=0 // pred_check
    _
  $region15: #{map_loss.1} parent=0 // pred_check_branch
    %41 = sbr.rel (0) target = $region17
  $region16: #{map_loss.1} parent=0 // pred_region
    _
  $region17: #{map_loss.1} parent=0 // pred_fallthru
    _
  // Predicated region
  $region18: #{map_loss.1} parent=0 // pred_check
    _
  $region19: #{map_loss.1} parent=0 // pred_check_branch
    %43 = sbr.rel (0) target = $region21
  $region20: #{map_loss.1} parent=0 // pred_region
    _
  $region21: #{map_loss.1} parent=0 // pred_fallthru
    _
  // Predicated region
  $region22: #{map_loss.1} parent=0 // pred_check
    _
  $region23: #{map_loss.1} parent=0 // pred_check_branch
    %45 = sbr.rel (0) target = $region25
  $region24: #{map_loss.1} parent=0 // pred_region
    _
  $region25: #{map_loss.1} parent=0 // pred_fallthru
    _
  // Predicated region
  $region26: #{map_loss.1} parent=0 // pred_check
    _
  $region27: #{map_loss.1} parent=0 // pred_check_branch
    %47 = sbr.rel (0) target = $region29
  $region28: #{map_loss.1} parent=0 // pred_region
    _
  $region29: #{map_loss.1} parent=0 // pred_fallthru
    _

</llo_original>
